<compile_context>
chip_gen: v6e
topology: v6e:2x2x1
jax: 0.10.0
libtpu: 0.0.40
codegen_flags: <defaults>
</compile_context>

<pallas_src>
import jax
import jax.numpy as jnp
from jax.experimental import pallas as pl
from jax.experimental.pallas import tpu as pltpu


def _transition_kernel(x_ref, scale_ref, bias_ref, w_ref, o_ref):
    # x_ref:     (4, T, Cin)      bf16 activations; axis 0 enumerates the 2x2 window
    # scale_ref: (1, Cin)  f32    gamma / sqrt(var + eps)
    # bias_ref:  (1, Cin)  f32    beta - mean * scale
    # w_ref:     (Cin, Cout_pad)  bf16 1x1-conv weight, 0.25 pool factor folded in
    # o_ref:     (T, Cout_pad)    f32
    s = scale_ref[...]
    b = bias_ref[...]
    # BN + ReLU in f32 on the VPU; 2x2 average pool accumulated slab-by-slab so
    # the live f32 intermediate stays (T, Cin), not (4, T, Cin).
    pooled = jnp.maximum(x_ref[0].astype(jnp.float32) * s + b, 0.0)
    pooled = pooled + jnp.maximum(x_ref[1].astype(jnp.float32) * s + b, 0.0)
    pooled = pooled + jnp.maximum(x_ref[2].astype(jnp.float32) * s + b, 0.0)
    pooled = pooled + jnp.maximum(x_ref[3].astype(jnp.float32) * s + b, 0.0)
    # Single MXU matmul; 0.25 lives in the weight, accumulation in f32.
    o_ref[...] = jnp.dot(pooled.astype(jnp.bfloat16), w_ref[...],
                         preferred_element_type=jnp.float32).astype(o_ref.dtype)


def _round_up(x, m):
    return -(-x // m) * m


def _pick_tile(m, cin, cout_pad, budget_bytes=14 << 20, target=1024):
    """Largest multiple-of-8 tile <= target whose per-step VMEM footprint fits budget."""
    tile = max(8, min(target, _round_up(m, 8)))
    tile = (tile // 8) * 8

    def footprint(t):
        x_blk = 2 * 4 * t * cin * 2       # bf16 x tile, double-buffered
        o_blk = 2 * t * cout_pad * 4      # f32 out tile, double-buffered
        w_blk = 2 * cin * cout_pad * 2    # bf16 weight (default double-buffer)
        sb_blk = 2 * 2 * cin * 4          # scale + bias
        return x_blk + o_blk + w_blk + sb_blk

    while tile > 8 and footprint(tile) > budget_bytes:
        tile -= 8
    return tile


def transition_forward(x_nchw, gamma, beta, conv_w, eps=1e-5,
                       running_mean=None, running_var=None):
    """x_nchw: (N, Cin, H, W); conv_w: (Cout, Cin, 1, 1). Returns (N, Cout, H//2, W//2).

    Training-mode BatchNorm (batch stats) by default; pass running_mean/running_var
    to reproduce eval-mode behaviour.
    """
    N, Cin, H, W = x_nchw.shape
    Cout = conv_w.shape[0]
    Ho, Wo = H // 2, W // 2          # AvgPool2d(2) drops trailing row/col on odd dims
    HoWo = Ho * Wo
    M = N * HoWo

    # --- BatchNorm statistics (computed on the ORIGINAL tensor, full spatial
    # extent, f32, centered two-pass variance — matches PyTorch BN numerics). ---
    if running_mean is not None and running_var is not None:
        mean = running_mean.astype(jnp.float32)
        var = running_var.astype(jnp.float32)
    else:
        x32 = x_nchw.astype(jnp.float32)
        mean = jnp.mean(x32, axis=(0, 2, 3))
        var = jnp.mean(jnp.square(x32 - mean[None, :, None, None]), axis=(0, 2, 3))
    scale = gamma.astype(jnp.float32) / jnp.sqrt(var + eps)
    bias = beta.astype(jnp.float32) - mean * scale

    # --- Single layout pass, in bf16 to halve the xr HBM traffic:
    # NCHW -> (4, N*Ho*Wo, Cin), axis 0 enumerating the 2x2 pool window. ---
    xr = x_nchw[:, :, :2 * Ho, :2 * Wo].astype(jnp.bfloat16)
    xr = xr.reshape(N, Cin, Ho, 2, Wo, 2)
    xr = jnp.transpose(xr, (3, 5, 0, 2, 4, 1)).reshape(4, M, Cin)

    # --- Conv weight: fold 0.25, pad Cout to a lane-dense multiple of 128, bf16. ---
    Cout_pad = _round_up(Cout, 128)
    w = (0.25 * conv_w[:, :, 0, 0].T).astype(jnp.float32)       # (Cin, Cout)
    w = jnp.pad(w, ((0, 0), (0, Cout_pad - Cout))).astype(jnp.bfloat16)

    # --- VMEM-budget-driven tile over the flattened N*Ho*Wo axis; pad the tail. ---
    tile = _pick_tile(M, Cin, Cout_pad)
    M_pad = _round_up(M, tile)
    if M_pad > M:
        xr = jnp.pad(xr, ((0, 0), (0, M_pad - M), (0, 0)))
    grid = (M_pad // tile,)

    out = pl.pallas_call(
        _transition_kernel,
        out_shape=jax.ShapeDtypeStruct((M_pad, Cout_pad), jnp.float32),
        grid_spec=pltpu.PrefetchScalarGridSpec(
            num_scalar_prefetch=0,
            grid=grid,
            in_specs=[
                pl.BlockSpec((4, tile, Cin), lambda t: (0, t, 0)),
                pl.BlockSpec((1, Cin), lambda t: (0, 0)),
                pl.BlockSpec((1, Cin), lambda t: (0, 0)),
                pl.BlockSpec((Cin, Cout_pad), lambda t: (0, 0)),
            ],
            out_specs=pl.BlockSpec((tile, Cout_pad), lambda t: (t, 0)),
        ),
        compiler_params=pltpu.CompilerParams(
            dimension_semantics=("parallel",),
            vmem_limit_bytes=32 * 1024 * 1024,
        ),
    )(xr, scale[None, :], bias[None, :], w)

    # (M_pad, Cout_pad) -> drop padding -> (N, Cout, Ho, Wo)
    out = out[:M, :Cout].reshape(N, Ho, Wo, Cout)
    return jnp.transpose(out, (0, 3, 1, 2))


def transition_reference(x_nchw, gamma, beta, conv_w, eps=1e-5):
    """Pure-JAX (f32) reference of the PyTorch forward, for verification."""
    x = x_nchw.astype(jnp.float32)
    mean = jnp.mean(x, axis=(0, 2, 3), keepdims=True)
    var = jnp.mean((x - mean) ** 2, axis=(0, 2, 3), keepdims=True)
    xn = (x - mean) / jnp.sqrt(var + eps)
    xn = xn * gamma[None, :, None, None] + beta[None, :, None, None]
    xr = jnp.maximum(xn, 0.0)
    y = jnp.einsum("nchw,oc->nohw", xr, conv_w[:, :, 0, 0])
    N, Co, H, W = y.shape
    y = y[:, :, :2 * (H // 2), :2 * (W // 2)]
    y = y.reshape(N, Co, H // 2, 2, W // 2, 2).mean(axis=(3, 5))
    return y


if __name__ == "__main__":
    inplanes, outplanes = 4, 8
    N, H, W = 2, 16, 16

    key = jax.random.PRNGKey(0)
    k_x, k_g, k_b, k_w = jax.random.split(key, 4)

    x = jax.random.normal(k_x, (N, inplanes, H, W), dtype=jnp.float32)
    gamma = 1.0 + 0.1 * jax.random.normal(k_g, (inplanes,), dtype=jnp.float32)
    beta = 0.1 * jax.random.normal(k_b, (inplanes,), dtype=jnp.float32)
    conv_w = jax.random.normal(k_w, (outplanes, inplanes, 1, 1), dtype=jnp.float32) * 0.5

    out = transition_forward(x, gamma, beta, conv_w)
    out = jax.block_until_ready(out)

    ref = transition_reference(x, gamma, beta, conv_w)
    assert out.shape == (N, outplanes, H // 2, W // 2), out.shape
    # Activations + MXU operands are bf16 (f32 accumulation): widened tolerance
    # is a deliberate accuracy/bandwidth trade-off vs. PyTorch's f32 conv.
    err = float(jnp.max(jnp.abs(out - ref)))
    assert jnp.allclose(out, ref, atol=5e-2, rtol=5e-2), err

    print("KERNEL_OK")
</pallas_src>

<mosaic_0001>
module attributes {stable_mosaic.version = 11 : i64} {
  func.func @_transition_kernel(%arg0: i32, %arg1: memref<4x128x4xbf16, #tpu.memory_space<vmem>>, %arg2: memref<1x4xf32, #tpu.memory_space<vmem>>, %arg3: memref<1x4xf32, #tpu.memory_space<vmem>>, %arg4: memref<4x128xbf16, #tpu.memory_space<vmem>>, %arg5: memref<128x128xf32, #tpu.memory_space<vmem>>) attributes {dimension_semantics = [#tpu.dimension_semantics<parallel>], iteration_bounds = array<i64: 1>, scalar_prefetch = 0 : i64, scratch_operands = 0 : i64, tpu.core_type = #tpu.core_type<tc>, window_params = [{transform_indices = @transform_0, window_bounds = array<i64: 4, 128, 4>}, {pipeline_mode = #tpu.pipeline_mode<synchronous>, transform_indices = @transform_1, window_bounds = array<i64: 1, 4>}, {pipeline_mode = #tpu.pipeline_mode<synchronous>, transform_indices = @transform_2, window_bounds = array<i64: 1, 4>}, {pipeline_mode = #tpu.pipeline_mode<synchronous>, transform_indices = @transform_3, window_bounds = array<i64: 4, 128>}, {transform_indices = @transform_4, window_bounds = array<i64: 128, 128>}]} {
    %c0 = arith.constant 0 : index
    %c0_0 = arith.constant 0 : index
    %0 = vector.load %arg2[%c0, %c0_0] : memref<1x4xf32, #tpu.memory_space<vmem>>, vector<1x4xf32>
    %c0_1 = arith.constant 0 : index
    %c0_2 = arith.constant 0 : index
    %1 = vector.load %arg3[%c0_1, %c0_2] : memref<1x4xf32, #tpu.memory_space<vmem>>, vector<1x4xf32>
    %c0_3 = arith.constant 0 : index
    %c0_4 = arith.constant 0 : index
    %c0_5 = arith.constant 0 : index
    %2 = vector.load %arg1[%c0_3, %c0_4, %c0_5] : memref<4x128x4xbf16, #tpu.memory_space<vmem>>, vector<1x128x4xbf16>
    %3 = vector.shape_cast %2 : vector<1x128x4xbf16> to vector<128x4xbf16>
    %4 = arith.extf %3 : vector<128x4xbf16> to vector<128x4xf32>
    %5 = vector.broadcast %0 : vector<1x4xf32> to vector<128x4xf32>
    %6 = arith.mulf %4, %5 : vector<128x4xf32>
    %7 = vector.broadcast %1 : vector<1x4xf32> to vector<128x4xf32>
    %8 = arith.addf %6, %7 : vector<128x4xf32>
    %cst = arith.constant 0.000000e+00 : f32
    %9 = vector.broadcast %cst : f32 to vector<128x4xf32>
    %10 = arith.maximumf %8, %9 : vector<128x4xf32>
    %c1 = arith.constant 1 : index
    %c0_6 = arith.constant 0 : index
    %c0_7 = arith.constant 0 : index
    %11 = vector.load %arg1[%c1, %c0_6, %c0_7] : memref<4x128x4xbf16, #tpu.memory_space<vmem>>, vector<1x128x4xbf16>
    %12 = vector.shape_cast %11 : vector<1x128x4xbf16> to vector<128x4xbf16>
    %13 = arith.extf %12 : vector<128x4xbf16> to vector<128x4xf32>
    %14 = vector.broadcast %0 : vector<1x4xf32> to vector<128x4xf32>
    %15 = arith.mulf %13, %14 : vector<128x4xf32>
    %16 = vector.broadcast %1 : vector<1x4xf32> to vector<128x4xf32>
    %17 = arith.addf %15, %16 : vector<128x4xf32>
    %cst_8 = arith.constant 0.000000e+00 : f32
    %18 = vector.broadcast %cst_8 : f32 to vector<128x4xf32>
    %19 = arith.maximumf %17, %18 : vector<128x4xf32>
    %20 = arith.addf %10, %19 : vector<128x4xf32>
    %c2 = arith.constant 2 : index
    %c0_9 = arith.constant 0 : index
    %c0_10 = arith.constant 0 : index
    %21 = vector.load %arg1[%c2, %c0_9, %c0_10] : memref<4x128x4xbf16, #tpu.memory_space<vmem>>, vector<1x128x4xbf16>
    %22 = vector.shape_cast %21 : vector<1x128x4xbf16> to vector<128x4xbf16>
    %23 = arith.extf %22 : vector<128x4xbf16> to vector<128x4xf32>
    %24 = vector.broadcast %0 : vector<1x4xf32> to vector<128x4xf32>
    %25 = arith.mulf %23, %24 : vector<128x4xf32>
    %26 = vector.broadcast %1 : vector<1x4xf32> to vector<128x4xf32>
    %27 = arith.addf %25, %26 : vector<128x4xf32>
    %cst_11 = arith.constant 0.000000e+00 : f32
    %28 = vector.broadcast %cst_11 : f32 to vector<128x4xf32>
    %29 = arith.maximumf %27, %28 : vector<128x4xf32>
    %30 = arith.addf %20, %29 : vector<128x4xf32>
    %c3 = arith.constant 3 : index
    %c0_12 = arith.constant 0 : index
    %c0_13 = arith.constant 0 : index
    %31 = vector.load %arg1[%c3, %c0_12, %c0_13] : memref<4x128x4xbf16, #tpu.memory_space<vmem>>, vector<1x128x4xbf16>
    %32 = vector.shape_cast %31 : vector<1x128x4xbf16> to vector<128x4xbf16>
    %33 = arith.extf %32 : vector<128x4xbf16> to vector<128x4xf32>
    %34 = vector.broadcast %0 : vector<1x4xf32> to vector<128x4xf32>
    %35 = arith.mulf %33, %34 : vector<128x4xf32>
    %36 = vector.broadcast %1 : vector<1x4xf32> to vector<128x4xf32>
    %37 = arith.addf %35, %36 : vector<128x4xf32>
    %cst_14 = arith.constant 0.000000e+00 : f32
    %38 = vector.broadcast %cst_14 : f32 to vector<128x4xf32>
    %39 = arith.maximumf %37, %38 : vector<128x4xf32>
    %40 = arith.addf %30, %39 : vector<128x4xf32>
    %41 = arith.truncf %40 : vector<128x4xf32> to vector<128x4xbf16>
    %c0_15 = arith.constant 0 : index
    %c0_16 = arith.constant 0 : index
    %42 = vector.load %arg4[%c0_15, %c0_16] : memref<4x128xbf16, #tpu.memory_space<vmem>>, vector<4x128xbf16>
    %cst_17 = arith.constant dense<0.000000e+00> : vector<128x128xf32>
    %43 = tpu.matmul %41, %42, %cst_17 {dimension_numbers = #tpu.dot_dimension_numbers<[1], [0], [0], [1], [0, 0, 1, 1], [], []>} : vector<128x4xbf16>, vector<4x128xbf16>, vector<128x128xf32> -> vector<128x128xf32>
    %c0_18 = arith.constant 0 : index
    %c0_19 = arith.constant 0 : index
    %44 = vector.load %arg5[%c0_18, %c0_19] : memref<128x128xf32, #tpu.memory_space<vmem>>, vector<128x128xf32>
    tpu.vector_store %arg5[%c0_18, %c0_19], %43 {strides = array<i32>} : memref<128x128xf32, #tpu.memory_space<vmem>>, vector<128x128xf32>,
    return
  }
  func.func @transform_0(%arg0: i32) -> (i32, i32, i32) {
    %c0_i32 = arith.constant 0 : i32
    %c0_i32_0 = arith.constant 0 : i32
    %c0_i32_1 = arith.constant 0 : i32
    return %c0_i32, %arg0, %c0_i32_0 : i32, i32, i32
  }
  func.func @transform_1(%arg0: i32) -> (i32, i32) {
    %c0_i32 = arith.constant 0 : i32
    %c0_i32_0 = arith.constant 0 : i32
    %c0_i32_1 = arith.constant 0 : i32
    return %c0_i32, %c0_i32_0 : i32, i32
  }
  func.func @transform_2(%arg0: i32) -> (i32, i32) {
    %c0_i32 = arith.constant 0 : i32
    %c0_i32_0 = arith.constant 0 : i32
    %c0_i32_1 = arith.constant 0 : i32
    return %c0_i32, %c0_i32_0 : i32, i32
  }
  func.func @transform_3(%arg0: i32) -> (i32, i32) {
    %c0_i32 = arith.constant 0 : i32
    %c0_i32_0 = arith.constant 0 : i32
    %c0_i32_1 = arith.constant 0 : i32
    return %c0_i32, %c0_i32_0 : i32, i32
  }
  func.func @transform_4(%arg0: i32) -> (i32, i32) {
    %c0_i32 = arith.constant 0 : i32
    %c0_i32_0 = arith.constant 0 : i32
    return %arg0, %c0_i32 : i32, i32
  }
}

</mosaic_0001>

<llo_original>
// kernel: tpu_custom_call.1
$region0: #{tpu_custom_call.1}
  #allocation0 [shape = 'u32[]', space=smem, size = 0x4, offset = 0x4, fixed_abs, tag = 'smem constant byte address 0x4 - core index']
  #allocation1 [shape = 'u32[144,128]{1,0:T(1,128)}', space=vmem, size = 0x12000, scoped, tag = 'internal scratch']
  %s0 = inlined_call_operand.vmem [shape: bf16[4,128,4], index: 0, kind: input, shape index: {}]
  %s1 = inlined_call_operand.vmem [shape: f32[1,4], index: 1, kind: input, shape index: {}]
  %s2 = inlined_call_operand.vmem [shape: f32[1,4], index: 2, kind: input, shape index: {}]
  %s3 = inlined_call_operand.vmem [shape: bf16[4,128], index: 3, kind: input, shape index: {}]
  %s4 = inlined_call_operand.hbm [shape: f32[128,128], index: 4, kind: output, shape index: {}]
  %s5 = sld [smem:[#allocation0]]
  $region26: #{tpu_custom_call.1} parent=0
    _
  %s7 = ssub.s32 1, %s5
  %s8 = scalar_select 0, %s7, %s5
  $region1: #{tpu_custom_call.1} parent=0
    #allocation2 [shape = 'u8[65536]{0}', space=vmem, size = 0x10000, scoped, tag = 'output window, operand 0, single buffered']
    #allocation3 [shape = 's32[1]{0}', space=sflag, size = 0x4, scoped, tag = 'scoped memory for tpu_custom_call.1']
    %9 = vsyncpa [#allocation3], 0
    // Predicated region
    $region2: #{tpu_custom_call.1} parent=1 // pred_check
      _
    $region3: #{tpu_custom_call.1} parent=1 // pred_check_branch
      %11 = sbr.rel (0) target = $region5
    $region4: #{tpu_custom_call.1} parent=1 // pred_region
      _
    $region5: #{tpu_custom_call.1} parent=1 // pred_fallthru
      _
    // Predicated region
    $region6: #{tpu_custom_call.1} parent=1 // pred_check
      _
    $region7: #{tpu_custom_call.1} parent=1 // pred_check_branch
      %13 = sbr.rel (0) target = $region9
    $region8: #{tpu_custom_call.1} parent=1 // pred_region
      _
    $region9: #{tpu_custom_call.1} parent=1 // pred_fallthru
      _
    // Predicated region
    $region10: #{tpu_custom_call.1} parent=1 // pred_check
      _
    $region11: #{tpu_custom_call.1} parent=1 // pred_check_branch
      %15 = sbr.rel (0) target = $region13
    $region12: #{tpu_custom_call.1} parent=1 // pred_region
      _
    $region13: #{tpu_custom_call.1} parent=1 // pred_fallthru
      _
    // Predicated region
    $region14: #{tpu_custom_call.1} parent=1 // pred_check
      _
    $region15: #{tpu_custom_call.1} parent=1 // pred_check_branch
      %17 = sbr.rel (0) target = $region17
    $region16: #{tpu_custom_call.1} parent=1 // pred_region
      _
    $region17: #{tpu_custom_call.1} parent=1 // pred_fallthru
      _
    %v19 = vld [vmem:[%s1] sm:$0x1]
    %v20 = vld [vmem:[%s2] sm:$0x1]
    %v21 = vld [vmem:[%s0] sm:$0xf]
    %v22 = vld [vmem:[%s0 + $0x4] sm:$0xf]
    %v23 = vld [vmem:[%s0 + $0x8] sm:$0xf]
    %v24 = vld [vmem:[%s0 + $0xc] sm:$0xf]
    %v25 = vld [vmem:[%s0 + $0x10] sm:$0xf]
    %v26 = vld [vmem:[%s0 + $0x14] sm:$0xf]
    %v27 = vld [vmem:[%s0 + $0x18] sm:$0xf]
    %v28 = vld [vmem:[%s0 + $0x1c] sm:$0xf]
    %v29 = vld [vmem:[%s0 + $0x20] sm:$0xf]
    %v30 = vld [vmem:[%s0 + $0x24] sm:$0xf]
    %v31 = vld [vmem:[%s0 + $0x28] sm:$0xf]
    %v32 = vld [vmem:[%s0 + $0x2c] sm:$0xf]
    %v33 = vld [vmem:[%s0 + $0x30] sm:$0xf]
    %v34 = vld [vmem:[%s0 + $0x34] sm:$0xf]
    %v35 = vld [vmem:[%s0 + $0x38] sm:$0xf]
    %v36 = vld [vmem:[%s0 + $0x3c] sm:$0xf]
    %v37 = vunpack.c.l.bf16 %v21
    %v38 = vunpack.c.l.bf16 %v22
    %v39 = vunpack.c.l.bf16 %v23
    %v40 = vunpack.c.l.bf16 %v24
    %v41 = vunpack.c.l.bf16 %v25
    %v42 = vunpack.c.l.bf16 %v26
    %v43 = vunpack.c.l.bf16 %v27
    %v44 = vunpack.c.l.bf16 %v28
    %v45 = vunpack.c.l.bf16 %v29
    %v46 = vunpack.c.l.bf16 %v30
    %v47 = vunpack.c.l.bf16 %v31
    %v48 = vunpack.c.l.bf16 %v32
    %v49 = vunpack.c.l.bf16 %v33
    %v50 = vunpack.c.l.bf16 %v34
    %v51 = vunpack.c.l.bf16 %v35
    %v52 = vunpack.c.l.bf16 %v36
    %v54 = vlaneseq
    %v55 = vshrl.u32 %v54, 7
    %v56 = vsub.s32 0, %v55
    %v57 = vrot.slane %v19, %v56
    %v59 = vmul.f32 %v37, %v57
    %v60 = vmul.f32 %v38, %v57
    %v61 = vmul.f32 %v39, %v57
    %v62 = vmul.f32 %v40, %v57
    %v63 = vmul.f32 %v41, %v57
    %v64 = vmul.f32 %v42, %v57
    %v65 = vmul.f32 %v43, %v57
    %v66 = vmul.f32 %v44, %v57
    %v67 = vmul.f32 %v45, %v57
    %v68 = vmul.f32 %v46, %v57
    %v69 = vmul.f32 %v47, %v57
    %v70 = vmul.f32 %v48, %v57
    %v71 = vmul.f32 %v49, %v57
    %v72 = vmul.f32 %v50, %v57
    %v73 = vmul.f32 %v51, %v57
    %v74 = vmul.f32 %v52, %v57
    %v76 = vlaneseq
    %v77 = vshrl.u32 %v76, 7
    %v78 = vsub.s32 0, %v77
    %v79 = vrot.slane %v20, %v78
    %v81 = vadd.f32 %v59, %v79
    %v82 = vadd.f32 %v60, %v79
    %v83 = vadd.f32 %v61, %v79
    %v84 = vadd.f32 %v62, %v79
    %v85 = vadd.f32 %v63, %v79
    %v86 = vadd.f32 %v64, %v79
    %v87 = vadd.f32 %v65, %v79
    %v88 = vadd.f32 %v66, %v79
    %v89 = vadd.f32 %v67, %v79
    %v90 = vadd.f32 %v68, %v79
    %v91 = vadd.f32 %v69, %v79
    %v92 = vadd.f32 %v70, %v79
    %v93 = vadd.f32 %v71, %v79
    %v94 = vadd.f32 %v72, %v79
    %v95 = vadd.f32 %v73, %v79
    %v96 = vadd.f32 %v74, %v79
    %v97 = vmax.f32 %v81, 0.0
    %v98 = vmax.f32 %v82, 0.0
    %v99 = vmax.f32 %v83, 0.0
    %v100 = vmax.f32 %v84, 0.0
    %v101 = vmax.f32 %v85, 0.0
    %v102 = vmax.f32 %v86, 0.0
    %v103 = vmax.f32 %v87, 0.0
    %v104 = vmax.f32 %v88, 0.0
    %v105 = vmax.f32 %v89, 0.0
    %v106 = vmax.f32 %v90, 0.0
    %v107 = vmax.f32 %v91, 0.0
    %v108 = vmax.f32 %v92, 0.0
    %v109 = vmax.f32 %v93, 0.0
    %v110 = vmax.f32 %v94, 0.0
    %v111 = vmax.f32 %v95, 0.0
    %v112 = vmax.f32 %v96, 0.0
    %s113 = scalar_lea.vmem %s0, 64
    %v114 = vld [vmem:[%s113] sm:$0xf]
    %v115 = vld [vmem:[%s113 + $0x4] sm:$0xf]
    %v116 = vld [vmem:[%s113 + $0x8] sm:$0xf]
    %v117 = vld [vmem:[%s113 + $0xc] sm:$0xf]
    %v118 = vld [vmem:[%s113 + $0x10] sm:$0xf]
    %v119 = vld [vmem:[%s113 + $0x14] sm:$0xf]
    %v120 = vld [vmem:[%s113 + $0x18] sm:$0xf]
    %v121 = vld [vmem:[%s113 + $0x1c] sm:$0xf]
    %v122 = vld [vmem:[%s113 + $0x20] sm:$0xf]
    %v123 = vld [vmem:[%s113 + $0x24] sm:$0xf]
    %v124 = vld [vmem:[%s113 + $0x28] sm:$0xf]
    %v125 = vld [vmem:[%s113 + $0x2c] sm:$0xf]
    %v126 = vld [vmem:[%s113 + $0x30] sm:$0xf]
    %v127 = vld [vmem:[%s113 + $0x34] sm:$0xf]
    %v128 = vld [vmem:[%s113 + $0x38] sm:$0xf]
    %v129 = vld [vmem:[%s113 + $0x3c] sm:$0xf]
    %v130 = vunpack.c.l.bf16 %v114
    %v131 = vunpack.c.l.bf16 %v115
    %v132 = vunpack.c.l.bf16 %v116
    %v133 = vunpack.c.l.bf16 %v117
    %v134 = vunpack.c.l.bf16 %v118
    %v135 = vunpack.c.l.bf16 %v119
    %v136 = vunpack.c.l.bf16 %v120
    %v137 = vunpack.c.l.bf16 %v121
    %v138 = vunpack.c.l.bf16 %v122
    %v139 = vunpack.c.l.bf16 %v123
    %v140 = vunpack.c.l.bf16 %v124
    %v141 = vunpack.c.l.bf16 %v125
    %v142 = vunpack.c.l.bf16 %v126
    %v143 = vunpack.c.l.bf16 %v127
    %v144 = vunpack.c.l.bf16 %v128
    %v145 = vunpack.c.l.bf16 %v129
    %v146 = vmul.f32 %v130, %v57
    %v147 = vmul.f32 %v131, %v57
    %v148 = vmul.f32 %v132, %v57
    %v149 = vmul.f32 %v133, %v57
    %v150 = vmul.f32 %v134, %v57
    %v151 = vmul.f32 %v135, %v57
    %v152 = vmul.f32 %v136, %v57
    %v153 = vmul.f32 %v137, %v57
    %v154 = vmul.f32 %v138, %v57
    %v155 = vmul.f32 %v139, %v57
    %v156 = vmul.f32 %v140, %v57
    %v157 = vmul.f32 %v141, %v57
    %v158 = vmul.f32 %v142, %v57
    %v159 = vmul.f32 %v143, %v57
    %v160 = vmul.f32 %v144, %v57
    %v161 = vmul.f32 %v145, %v57
    %v162 = vadd.f32 %v146, %v79
    %v163 = vadd.f32 %v147, %v79
    %v164 = vadd.f32 %v148, %v79
    %v165 = vadd.f32 %v149, %v79
    %v166 = vadd.f32 %v150, %v79
    %v167 = vadd.f32 %v151, %v79
    %v168 = vadd.f32 %v152, %v79
    %v169 = vadd.f32 %v153, %v79
    %v170 = vadd.f32 %v154, %v79
    %v171 = vadd.f32 %v155, %v79
    %v172 = vadd.f32 %v156, %v79
    %v173 = vadd.f32 %v157, %v79
    %v174 = vadd.f32 %v158, %v79
    %v175 = vadd.f32 %v159, %v79
    %v176 = vadd.f32 %v160, %v79
    %v177 = vadd.f32 %v161, %v79
    %v178 = vmax.f32 %v162, 0.0
    %v179 = vmax.f32 %v163, 0.0
    %v180 = vmax.f32 %v164, 0.0
    %v181 = vmax.f32 %v165, 0.0
    %v182 = vmax.f32 %v166, 0.0
    %v183 = vmax.f32 %v167, 0.0
    %v184 = vmax.f32 %v168, 0.0
    %v185 = vmax.f32 %v169, 0.0
    %v186 = vmax.f32 %v170, 0.0
    %v187 = vmax.f32 %v171, 0.0
    %v188 = vmax.f32 %v172, 0.0
    %v189 = vmax.f32 %v173, 0.0
    %v190 = vmax.f32 %v174, 0.0
    %v191 = vmax.f32 %v175, 0.0
    %v192 = vmax.f32 %v176, 0.0
    %v193 = vmax.f32 %v177, 0.0
    %v194 = vadd.f32 %v97, %v178
    %v195 = vadd.f32 %v98, %v179
    %v196 = vadd.f32 %v99, %v180
    %v197 = vadd.f32 %v100, %v181
    %v198 = vadd.f32 %v101, %v182
    %v199 = vadd.f32 %v102, %v183
    %v200 = vadd.f32 %v103, %v184
    %v201 = vadd.f32 %v104, %v185
    %v202 = vadd.f32 %v105, %v186
    %v203 = vadd.f32 %v106, %v187
    %v204 = vadd.f32 %v107, %v188
    %v205 = vadd.f32 %v108, %v189
    %v206 = vadd.f32 %v109, %v190
    %v207 = vadd.f32 %v110, %v191
    %v208 = vadd.f32 %v111, %v192
    %v209 = vadd.f32 %v112, %v193
    %s210 = scalar_lea.vmem %s0, 128
    %v211 = vld [vmem:[%s210] sm:$0xf]
    %v212 = vld [vmem:[%s210 + $0x4] sm:$0xf]
    %v213 = vld [vmem:[%s210 + $0x8] sm:$0xf]
    %v214 = vld [vmem:[%s210 + $0xc] sm:$0xf]
    %v215 = vld [vmem:[%s210 + $0x10] sm:$0xf]
    %v216 = vld [vmem:[%s210 + $0x14] sm:$0xf]
    %v217 = vld [vmem:[%s210 + $0x18] sm:$0xf]
    %v218 = vld [vmem:[%s210 + $0x1c] sm:$0xf]
    %v219 = vld [vmem:[%s210 + $0x20] sm:$0xf]
    %v220 = vld [vmem:[%s210 + $0x24] sm:$0xf]
    %v221 = vld [vmem:[%s210 + $0x28] sm:$0xf]
    %v222 = vld [vmem:[%s210 + $0x2c] sm:$0xf]
    %v223 = vld [vmem:[%s210 + $0x30] sm:$0xf]
    %v224 = vld [vmem:[%s210 + $0x34] sm:$0xf]
    %v225 = vld [vmem:[%s210 + $0x38] sm:$0xf]
    %v226 = vld [vmem:[%s210 + $0x3c] sm:$0xf]
    %v227 = vunpack.c.l.bf16 %v211
    %v228 = vunpack.c.l.bf16 %v212
    %v229 = vunpack.c.l.bf16 %v213
    %v230 = vunpack.c.l.bf16 %v214
    %v231 = vunpack.c.l.bf16 %v215
    %v232 = vunpack.c.l.bf16 %v216
    %v233 = vunpack.c.l.bf16 %v217
    %v234 = vunpack.c.l.bf16 %v218
    %v235 = vunpack.c.l.bf16 %v219
    %v236 = vunpack.c.l.bf16 %v220
    %v237 = vunpack.c.l.bf16 %v221
    %v238 = vunpack.c.l.bf16 %v222
    %v239 = vunpack.c.l.bf16 %v223
    %v240 = vunpack.c.l.bf16 %v224
    %v241 = vunpack.c.l.bf16 %v225
    %v242 = vunpack.c.l.bf16 %v226
    %v243 = vmul.f32 %v227, %v57
    %v244 = vmul.f32 %v228, %v57
    %v245 = vmul.f32 %v229, %v57
    %v246 = vmul.f32 %v230, %v57
    %v247 = vmul.f32 %v231, %v57
    %v248 = vmul.f32 %v232, %v57
    %v249 = vmul.f32 %v233, %v57
    %v250 = vmul.f32 %v234, %v57
    %v251 = vmul.f32 %v235, %v57
    %v252 = vmul.f32 %v236, %v57
    %v253 = vmul.f32 %v237, %v57
    %v254 = vmul.f32 %v238, %v57
    %v255 = vmul.f32 %v239, %v57
    %v256 = vmul.f32 %v240, %v57
    %v257 = vmul.f32 %v241, %v57
    %v258 = vmul.f32 %v242, %v57
    %v259 = vadd.f32 %v243, %v79
    %v260 = vadd.f32 %v244, %v79
    %v261 = vadd.f32 %v245, %v79
    %v262 = vadd.f32 %v246, %v79
    %v263 = vadd.f32 %v247, %v79
    %v264 = vadd.f32 %v248, %v79
    %v265 = vadd.f32 %v249, %v79
    %v266 = vadd.f32 %v250, %v79
    %v267 = vadd.f32 %v251, %v79
    %v268 = vadd.f32 %v252, %v79
    %v269 = vadd.f32 %v253, %v79
    %v270 = vadd.f32 %v254, %v79
    %v271 = vadd.f32 %v255, %v79
    %v272 = vadd.f32 %v256, %v79
    %v273 = vadd.f32 %v257, %v79
    %v274 = vadd.f32 %v258, %v79
    %v275 = vmax.f32 %v259, 0.0
    %v276 = vmax.f32 %v260, 0.0
    %v277 = vmax.f32 %v261, 0.0
    %v278 = vmax.f32 %v262, 0.0
    %v279 = vmax.f32 %v263, 0.0
    %v280 = vmax.f32 %v264, 0.0
    %v281 = vmax.f32 %v265, 0.0
    %v282 = vmax.f32 %v266, 0.0
    %v283 = vmax.f32 %v267, 0.0
    %v284 = vmax.f32 %v268, 0.0
    %v285 = vmax.f32 %v269, 0.0
    %v286 = vmax.f32 %v270, 0.0
    %v287 = vmax.f32 %v271, 0.0
    %v288 = vmax.f32 %v272, 0.0
    %v289 = vmax.f32 %v273, 0.0
    %v290 = vmax.f32 %v274, 0.0
    %v291 = vadd.f32 %v194, %v275
    %v292 = vadd.f32 %v195, %v276
    %v293 = vadd.f32 %v196, %v277
    %v294 = vadd.f32 %v197, %v278
    %v295 = vadd.f32 %v198, %v279
    %v296 = vadd.f32 %v199, %v280
    %v297 = vadd.f32 %v200, %v281
    %v298 = vadd.f32 %v201, %v282
    %v299 = vadd.f32 %v202, %v283
    %v300 = vadd.f32 %v203, %v284
    %v301 = vadd.f32 %v204, %v285
    %v302 = vadd.f32 %v205, %v286
    %v303 = vadd.f32 %v206, %v287
    %v304 = vadd.f32 %v207, %v288
    %v305 = vadd.f32 %v208, %v289
    %v306 = vadd.f32 %v209, %v290
    %s307 = scalar_lea.vmem %s0, 192
    %v308 = vld [vmem:[%s307] sm:$0xf]
    %v309 = vld [vmem:[%s307 + $0x4] sm:$0xf]
    %v310 = vld [vmem:[%s307 + $0x8] sm:$0xf]
    %v311 = vld [vmem:[%s307 + $0xc] sm:$0xf]
    %v312 = vld [vmem:[%s307 + $0x10] sm:$0xf]
    %v313 = vld [vmem:[%s307 + $0x14] sm:$0xf]
    %v314 = vld [vmem:[%s307 + $0x18] sm:$0xf]
    %v315 = vld [vmem:[%s307 + $0x1c] sm:$0xf]
    %v316 = vld [vmem:[%s307 + $0x20] sm:$0xf]
    %v317 = vld [vmem:[%s307 + $0x24] sm:$0xf]
    %v318 = vld [vmem:[%s307 + $0x28] sm:$0xf]
    %v319 = vld [vmem:[%s307 + $0x2c] sm:$0xf]
    %v320 = vld [vmem:[%s307 + $0x30] sm:$0xf]
    %v321 = vld [vmem:[%s307 + $0x34] sm:$0xf]
    %v322 = vld [vmem:[%s307 + $0x38] sm:$0xf]
    %v323 = vld [vmem:[%s307 + $0x3c] sm:$0xf]
    %v324 = vunpack.c.l.bf16 %v308
    %v325 = vunpack.c.l.bf16 %v309
    %v326 = vunpack.c.l.bf16 %v310
    %v327 = vunpack.c.l.bf16 %v311
    %v328 = vunpack.c.l.bf16 %v312
    %v329 = vunpack.c.l.bf16 %v313
    %v330 = vunpack.c.l.bf16 %v314
    %v331 = vunpack.c.l.bf16 %v315
    %v332 = vunpack.c.l.bf16 %v316
    %v333 = vunpack.c.l.bf16 %v317
    %v334 = vunpack.c.l.bf16 %v318
    %v335 = vunpack.c.l.bf16 %v319
    %v336 = vunpack.c.l.bf16 %v320
    %v337 = vunpack.c.l.bf16 %v321
    %v338 = vunpack.c.l.bf16 %v322
    %v339 = vunpack.c.l.bf16 %v323
    %v340 = vmul.f32 %v324, %v57
    %v341 = vmul.f32 %v325, %v57
    %v342 = vmul.f32 %v326, %v57
    %v343 = vmul.f32 %v327, %v57
    %v344 = vmul.f32 %v328, %v57
    %v345 = vmul.f32 %v329, %v57
    %v346 = vmul.f32 %v330, %v57
    %v347 = vmul.f32 %v331, %v57
    %v348 = vmul.f32 %v332, %v57
    %v349 = vmul.f32 %v333, %v57
    %v350 = vmul.f32 %v334, %v57
    %v351 = vmul.f32 %v335, %v57
    %v352 = vmul.f32 %v336, %v57
    %v353 = vmul.f32 %v337, %v57
    %v354 = vmul.f32 %v338, %v57
    %v355 = vmul.f32 %v339, %v57
    %v356 = vadd.f32 %v340, %v79
    %v357 = vadd.f32 %v341, %v79
    %v358 = vadd.f32 %v342, %v79
    %v359 = vadd.f32 %v343, %v79
    %v360 = vadd.f32 %v344, %v79
    %v361 = vadd.f32 %v345, %v79
    %v362 = vadd.f32 %v346, %v79
    %v363 = vadd.f32 %v347, %v79
    %v364 = vadd.f32 %v348, %v79
    %v365 = vadd.f32 %v349, %v79
    %v366 = vadd.f32 %v350, %v79
    %v367 = vadd.f32 %v351, %v79
    %v368 = vadd.f32 %v352, %v79
    %v369 = vadd.f32 %v353, %v79
    %v370 = vadd.f32 %v354, %v79
    %v371 = vadd.f32 %v355, %v79
    %v372 = vmax.f32 %v356, 0.0
    %v373 = vmax.f32 %v357, 0.0
    %v374 = vmax.f32 %v358, 0.0
    %v375 = vmax.f32 %v359, 0.0
    %v376 = vmax.f32 %v360, 0.0
    %v377 = vmax.f32 %v361, 0.0
    %v378 = vmax.f32 %v362, 0.0
    %v379 = vmax.f32 %v363, 0.0
    %v380 = vmax.f32 %v364, 0.0
    %v381 = vmax.f32 %v365, 0.0
    %v382 = vmax.f32 %v366, 0.0
    %v383 = vmax.f32 %v367, 0.0
    %v384 = vmax.f32 %v368, 0.0
    %v385 = vmax.f32 %v369, 0.0
    %v386 = vmax.f32 %v370, 0.0
    %v387 = vmax.f32 %v371, 0.0
    %v388 = vadd.f32 %v291, %v372
    %v389 = vadd.f32 %v292, %v373
    %v390 = vadd.f32 %v293, %v374
    %v391 = vadd.f32 %v294, %v375
    %v392 = vadd.f32 %v295, %v376
    %v393 = vadd.f32 %v296, %v377
    %v394 = vadd.f32 %v297, %v378
    %v395 = vadd.f32 %v298, %v379
    %v396 = vadd.f32 %v299, %v380
    %v397 = vadd.f32 %v300, %v381
    %v398 = vadd.f32 %v301, %v382
    %v399 = vadd.f32 %v302, %v383
    %v400 = vadd.f32 %v303, %v384
    %v401 = vadd.f32 %v304, %v385
    %v402 = vadd.f32 %v305, %v386
    %v403 = vadd.f32 %v306, %v387
    %v404 = vpack.c.bf16 %v389, %v388
    %v405 = vpack.c.bf16 %v391, %v390
    %v406 = vpack.c.bf16 %v393, %v392
    %v407 = vpack.c.bf16 %v395, %v394
    %v408 = vpack.c.bf16 %v397, %v396
    %v409 = vpack.c.bf16 %v399, %v398
    %v410 = vpack.c.bf16 %v401, %v400
    %v411 = vpack.c.bf16 %v403, %v402
    %v412 = vld [vmem:[%s3] sm:$0x3]
    %vm413 = vcmask 31744
    %v415 = vsel %vm413, %v404, 0
    %v418 = vsel %vm413, %v405, 0
    %v421 = vsel %vm413, %v406, 0
    %v424 = vsel %vm413, %v407, 0
    %v427 = vsel %vm413, %v408, 0
    %v430 = vsel %vm413, %v409, 0
    %v433 = vsel %vm413, %v410, 0
    %v436 = vsel %vm413, %v411, 0
    %vm438 = vcmask 1041408
    %v440 = vsel %vm438, %v412, 0
    %442 = vmatprep.subr.bf16.mxu0 0
    %443 = vmatpush1.bf16.msra.mxu0 0
    %444 = vmatprep.subr.bf16.mxu0 0
    %445 = vmatpush1.bf16.msra.mxu0 0
    %446 = vmatprep.subr.bf16.mxu0 0
    %447 = vmatpush1.bf16.msra.mxu0 0
    %448 = vmatprep.subr.bf16.mxu0 0
    %449 = vmatpush1.bf16.msra.mxu0 0
    %450 = vmatprep.subr.bf16.mxu0 0
    %451 = vmatpush1.bf16.msra.mxu0 0
    %452 = vmatprep.subr.bf16.mxu0 0
    %453 = vmatpush1.bf16.msra.mxu0 0
    %454 = vmatprep.subr.bf16.mxu0 0
    %455 = vmatpush1.bf16.msra.mxu0 0
    %456 = vmatprep.subr.bf16.mxu0 0
    %457 = vmatpush1.bf16.msra.mxu0 %v440
    %458 = vmatprep.subr.bf16.mxu0 0
    %459 = vmatpush2.bf16.msra.mxu0 0
    %460 = vmatprep.subr.bf16.mxu0 0
    %461 = vmatpush2.bf16.msra.mxu0 0
    %462 = vmatprep.subr.bf16.mxu0 0
    %463 = vmatpush2.bf16.msra.mxu0 0
    %464 = vmatprep.subr.bf16.mxu0 0
    %465 = vmatpush2.bf16.msra.mxu0 0
    %466 = vmatprep.subr.bf16.mxu0 0
    %467 = vmatpush2.bf16.msra.mxu0 0
    %468 = vmatprep.subr.bf16.mxu0 0
    %469 = vmatpush2.bf16.msra.mxu0 0
    %470 = vmatprep.subr.bf16.mxu0 0
    %471 = vmatpush2.bf16.msra.mxu0 0
    %472 = vmatprep.subr.bf16.mxu0 0
    %473 = vmatpush2.bf16.msra.mxu0 0
    %474 = vmatprep.mubr.bf16.mxu0 0
    %475 = vmatmul.mubr.bf16.gmra.mxu0 %v415
    %v476 = vpop.f32.mrf.mxu0
    %v477 = vadd.f32 0.0, %v476
    %v478 = vpop.f32.mrf.mxu0
    %v479 = vpop.f32.mrf.mxu0
    %v480 = vadd.f32 0.0, %v479
    %v481 = vpop.f32.mrf.mxu0
    %482 = vmatprep.mubr.bf16.mxu0 0
    %483 = vmatmul.mubr.bf16.gmra.mxu0 %v418
    %v484 = vpop.f32.mrf.mxu0
    %v485 = vadd.f32 0.0, %v484
    %v486 = vpop.f32.mrf.mxu0
    %v487 = vpop.f32.mrf.mxu0
    %v488 = vadd.f32 0.0, %v487
    %v489 = vpop.f32.mrf.mxu0
    %490 = vmatprep.mubr.bf16.mxu0 0
    %491 = vmatmul.mubr.bf16.gmra.mxu0 %v421
    %v492 = vpop.f32.mrf.mxu0
    %v493 = vadd.f32 0.0, %v492
    %v494 = vpop.f32.mrf.mxu0
    %v495 = vpop.f32.mrf.mxu0
    %v496 = vadd.f32 0.0, %v495
    %v497 = vpop.f32.mrf.mxu0
    %498 = vmatprep.mubr.bf16.mxu0 0
    %499 = vmatmul.mubr.bf16.gmra.mxu0 %v424
    %v500 = vpop.f32.mrf.mxu0
    %v501 = vadd.f32 0.0, %v500
    %v502 = vpop.f32.mrf.mxu0
    %v503 = vpop.f32.mrf.mxu0
    %v504 = vadd.f32 0.0, %v503
    %v505 = vpop.f32.mrf.mxu0
    %506 = vmatprep.mubr.bf16.mxu0 0
    %507 = vmatmul.mubr.bf16.gmra.mxu0 %v427
    %v508 = vpop.f32.mrf.mxu0
    %v509 = vadd.f32 0.0, %v508
    %v510 = vpop.f32.mrf.mxu0
    %v511 = vpop.f32.mrf.mxu0
    %v512 = vadd.f32 0.0, %v511
    %v513 = vpop.f32.mrf.mxu0
    %514 = vmatprep.mubr.bf16.mxu0 0
    %515 = vmatmul.mubr.bf16.gmra.mxu0 %v430
    %v516 = vpop.f32.mrf.mxu0
    %v517 = vadd.f32 0.0, %v516
    %v518 = vpop.f32.mrf.mxu0
    %v519 = vpop.f32.mrf.mxu0
    %v520 = vadd.f32 0.0, %v519
    %v521 = vpop.f32.mrf.mxu0
    %522 = vmatprep.mubr.bf16.mxu0 0
    %523 = vmatmul.mubr.bf16.gmra.mxu0 %v433
    %v524 = vpop.f32.mrf.mxu0
    %v525 = vadd.f32 0.0, %v524
    %v526 = vpop.f32.mrf.mxu0
    %v527 = vpop.f32.mrf.mxu0
    %v528 = vadd.f32 0.0, %v527
    %v529 = vpop.f32.mrf.mxu0
    %530 = vmatprep.mubr.bf16.mxu0 0
    %531 = vmatmul.mubr.bf16.gmra.mxu0 %v436
    %v532 = vpop.f32.mrf.mxu0
    %v533 = vadd.f32 0.0, %v532
    %v534 = vpop.f32.mrf.mxu0
    %v535 = vpop.f32.mrf.mxu0
    %v536 = vadd.f32 0.0, %v535
    %v537 = vpop.f32.mrf.mxu0
    %538 = vdwg.mxu0
    %539 = vst [vmem:[#allocation2] sm:$0xff] %v477
    %540 = vst [vmem:[#allocation2 + $0x8] sm:$0xff] %v480
    %541 = vst [vmem:[#allocation2 + $0x10] sm:$0xff] %v485
    %542 = vst [vmem:[#allocation2 + $0x18] sm:$0xff] %v488
    %543 = vst [vmem:[#allocation2 + $0x20] sm:$0xff] %v493
    %544 = vst [vmem:[#allocation2 + $0x28] sm:$0xff] %v496
    %545 = vst [vmem:[#allocation2 + $0x30] sm:$0xff] %v501
    %546 = vst [vmem:[#allocation2 + $0x38] sm:$0xff] %v504
    %547 = vst [vmem:[#allocation2 + $0x40] sm:$0xff] %v509
    %548 = vst [vmem:[#allocation2 + $0x48] sm:$0xff] %v512
    %549 = vst [vmem:[#allocation2 + $0x50] sm:$0xff] %v517
    %550 = vst [vmem:[#allocation2 + $0x58] sm:$0xff] %v520
    %551 = vst [vmem:[#allocation2 + $0x60] sm:$0xff] %v525
    %552 = vst [vmem:[#allocation2 + $0x68] sm:$0xff] %v528
    %553 = vst [vmem:[#allocation2 + $0x70] sm:$0xff] %v533
    %554 = vst [vmem:[#allocation2 + $0x78] sm:$0xff] %v536
    // Predicated region
    $region18: #{tpu_custom_call.1} parent=1 // pred_check
      _
    $region19: #{tpu_custom_call.1} parent=1 // pred_check_branch
      %556 = sbr.rel (0) target = $region21
    $region20: #{tpu_custom_call.1} parent=1 // pred_region
      %s558 = ssub.s32 2048, 2048
      %559 = vsyncadd [#allocation3], %s558
      %s560 = sshll.u32 [#allocation2], 4
      %s561 = int_to_ptr.vmem [resolvable:$true] %s560
      %566 = dma.vmem_to_hbm [thread:$0]  %s561, 2048, %s4, [#allocation3], 128, 128, 8
    $region21: #{tpu_custom_call.1} parent=1 // pred_fallthru
      _
    // Predicated region
    $region22: #{tpu_custom_call.1} parent=1 // pred_check
      _
    $region23: #{tpu_custom_call.1} parent=1 // pred_check_branch
      %568 = sbr.rel (0) target = $region25
    $region24: #{tpu_custom_call.1} parent=1 // pred_region
      %569 = dma.done [#allocation3], 2048
    $region25: #{tpu_custom_call.1} parent=1 // pred_fallthru
      _
    %570 = vsyncpa [#allocation3], 1

</llo_original>
